<compile_context>
chip_gen: v7x
topology: tpu7x:2x2x1
jax: 0.10.0
libtpu: 0.0.40
codegen_flags: <defaults>
</compile_context>

<pallas_src>
import jax
import jax.numpy as jnp
from jax.experimental import pallas as pl
from jax.experimental.pallas import tpu as pltpu

LANE = 128
SUBLANE = 8
N_OUT = 9
MiB = 1024 * 1024


def _round_up(x, m):
    return ((x + m - 1) // m) * m


def mlp_kernel(feat_ref, w_ref, b_ref, out_ref, acc_ref):
    # feat_ref: (TB, TS, F_eff)   w_ref: (F_eff, 128)  (pre-scaled by 1/S)
    # b_ref   : (1, 128)          out_ref: (TB, 128)
    # acc_ref : (TB, 8, F_eff) f32 scratch, resident across the sequence axis.
    k = pl.program_id(1)

    @pl.when(k == 0)
    def _init():
        acc_ref[...] = jnp.zeros_like(acc_ref)

    tb, ts, fe = feat_ref.shape
    x = feat_ref[...].astype(jnp.float32)
    if ts == SUBLANE:
        # Tile is exactly one sublane group: a single whole-vreg add.
        acc_ref[...] += x
    else:
        # Fold TS into groups of 8 sublanes: the reduce over axis=1 is
        # whole-vreg adds (pure VPU); no cross-sublane XLU work per step.
        acc_ref[...] += x.reshape(tb, ts // SUBLANE, SUBLANE, fe).sum(axis=1)

    @pl.when(k == pl.num_programs(1) - 1)
    def _finish():
        pooled = acc_ref[...].sum(axis=1)                     # single 8->1 reduce
        pred = jnp.dot(pooled, w_ref[...],
                       preferred_element_type=jnp.float32)    # (TB, 128)
        out_ref[...] = (pred + b_ref[...]).astype(out_ref.dtype)


def _vmem_capacity_bytes():
    try:
        return int(pltpu.get_tpu_info().vmem_capacity_bytes)
    except Exception:
        return 64 * MiB   # conservative default: v7x per-TensorCore VMEM


def _pick_batch_tile(B):
    tb = B
    for cand in (512, 256, 128, 64, 32, 16, 8):
        if B % cand == 0:
            tb = cand
            break
    # Keep >= 2 batch blocks when possible so the "parallel" axis can be
    # sharded across v7x's two TensorCores (harmless no-op on v5e/v6e).
    if B >= 16 and B // tb < 2:
        for cand in (tb // 2, tb // 4, tb // 8):
            if cand >= SUBLANE and B % cand == 0:
                tb = cand
                break
    return tb


def _pick_seq_tile(s_eff, tb, f_lane_pad, budget_bytes):
    """Sequence tile (in effective rows): multiple of 8, double-buffered fit."""
    s_r8 = _round_up(max(int(s_eff), 1), SUBLANE)
    row_bytes = 2 * tb * f_lane_pad * 4            # 2 buffers, lane-padded rows
    ts_max = (budget_bytes // row_bytes) // SUBLANE * SUBLANE
    ts_max = max(SUBLANE, min(s_r8, ts_max))
    if ts_max >= s_r8:
        return s_r8
    # Prefer a tile that divides the padded length exactly (no extra padding),
    # but never drop below half the budget-optimal tile size.
    for ts in range(ts_max, max(SUBLANE, ts_max // 2) - 1, -SUBLANE):
        if s_r8 % ts == 0:
            return ts
    return ts_max


def mlp_forward(features, weight, bias):
    """features: (B, S, F) float; weight: (9, F) (PyTorch layout); bias: (9,)."""
    B, S, F = features.shape

    # ---- lane-dense repacking of the feature stream (g raw rows per 128 lanes)
    g = (LANE // F) if (F < LANE and LANE % F == 0) else 1
    F_eff = g * F
    S_eff = -(-S // g)                                   # ceil(S / g)
    f_lane_pad = _round_up(F_eff, LANE)                  # true VMEM/vreg footprint

    # ---- generation-aware tiling budget --------------------------------------
    capacity = _vmem_capacity_bytes()
    feat_budget = int(0.40 * capacity)                   # double-buffered stream
    TB = _pick_batch_tile(B)
    TS = _pick_seq_tile(S_eff, TB, f_lane_pad, feat_budget)

    S_pad_eff = _round_up(S_eff, TS)
    S_pad_raw = S_pad_eff * g
    feats = features
    if S_pad_raw != S:
        feats = jnp.pad(feats, ((0, 0), (0, S_pad_raw - S), (0, 0)))
    feats = feats.reshape(B, S_pad_eff, F_eff)

    # ---- lane-dense params: fold mean (1/S) and the g-way tiling into W ------
    w_t = weight.astype(jnp.float32).T * (1.0 / S)       # (F, 9), pre-scaled
    w_block = jnp.zeros((F, LANE), jnp.float32).at[:, :N_OUT].set(w_t)
    w_eff = jnp.tile(w_block, (g, 1))                    # (F_eff, 128)
    b_pad = jnp.zeros((1, LANE), jnp.float32).at[:, :N_OUT].set(
        bias.astype(jnp.float32).reshape(1, N_OUT))

    grid = (B // TB, S_pad_eff // TS)

    # ---- complete VMEM accounting (lane-padded, scratch-inclusive) -----------
    feat_tile_bytes = TB * TS * f_lane_pad * 4
    acc_bytes = TB * SUBLANE * f_lane_pad * 4
    w_bytes = _round_up(F_eff, SUBLANE) * LANE * 4
    b_bytes = SUBLANE * LANE * 4
    out_bytes = max(TB, SUBLANE) * LANE * 4
    needed = (2 * feat_tile_bytes + acc_bytes + 2 * w_bytes + 2 * b_bytes
              + 2 * out_bytes + 2 * MiB)
    vmem_limit = int(min(capacity - 8 * MiB, max(needed, 32 * MiB)))

    out_pad = pl.pallas_call(
        mlp_kernel,
        out_shape=jax.ShapeDtypeStruct((B, LANE), jnp.float32),
        grid_spec=pltpu.PrefetchScalarGridSpec(
            num_scalar_prefetch=0,
            grid=grid,
            in_specs=[
                pl.BlockSpec((TB, TS, F_eff), lambda i, k: (i, k, 0)),   # features
                pl.BlockSpec((F_eff, LANE), lambda i, k: (0, 0)),        # weight
                pl.BlockSpec((1, LANE), lambda i, k: (0, 0)),            # bias
            ],
            out_specs=pl.BlockSpec((TB, LANE), lambda i, k: (i, 0)),
            scratch_shapes=[pltpu.VMEM((TB, SUBLANE, F_eff), jnp.float32)],
        ),
        compiler_params=pltpu.CompilerParams(
            dimension_semantics=("parallel", "arbitrary"),
            vmem_limit_bytes=vmem_limit,
        ),
        cost_estimate=pl.CostEstimate(
            flops=B * S * F + 2 * B * F_eff * LANE,
            bytes_accessed=(B * S * F * 4 + F_eff * LANE * 4
                            + LANE * 4 + B * LANE * 4),
            transcendentals=0,
        ),
    )(feats, w_eff, b_pad)

    # Slice the lane-dense slab back to the real 9 outputs.
    return {"high": out_pad[:, :N_OUT]}


if __name__ == "__main__":
    key = jax.random.PRNGKey(0)
    B, S, F = 2, 8, 32  # batch=2, seq=8, feat_dim=32

    k_feat, k_w, k_b = jax.random.split(key, 3)
    features = jax.random.normal(k_feat, (B, S, F), dtype=jnp.float32)

    # Deterministic nn.Linear(feat_dim, 9)-shaped params (PyTorch default range).
    bound = 1.0 / (F ** 0.5)
    w = jax.random.uniform(k_w, (9, F), minval=-bound, maxval=bound,
                           dtype=jnp.float32)   # PyTorch layout (out, in)
    b = jax.random.uniform(k_b, (9,), minval=-bound, maxval=bound,
                           dtype=jnp.float32)

    # The PyTorch forward's `batch` argument is unused; nothing to pass.
    out = mlp_forward(features, w, b)
    jax.block_until_ready(out["high"])

    # Reference check in plain JAX (same math as the PyTorch module).
    ref = features.mean(axis=1) @ w.T + b
    assert out["high"].shape == (B, 9)
    assert jnp.allclose(out["high"], ref, atol=1e-5, rtol=1e-5)

    print("KERNEL_OK")
</pallas_src>

<mosaic_0001>
module attributes {stable_mosaic.version = 11 : i64} {
  func.func @mlp_kernel(%arg0: i32, %arg1: i32, %arg2: memref<2x8x128xf32, #tpu.memory_space<vmem>>, %arg3: memref<128x128xf32, #tpu.memory_space<vmem>>, %arg4: memref<1x128xf32, #tpu.memory_space<vmem>>, %arg5: memref<2x128xf32, #tpu.memory_space<vmem>>, %arg6: memref<2x8x128xf32, #tpu.memory_space<vmem>>) attributes {dimension_semantics = [#tpu.dimension_semantics<parallel>, #tpu.dimension_semantics<arbitrary>], iteration_bounds = array<i64: 1, 1>, scalar_prefetch = 0 : i64, scratch_operands = 1 : i64, tpu.core_type = #tpu.core_type<tc>, window_params = [{transform_indices = @transform_0, window_bounds = array<i64: 2, 8, 128>}, {pipeline_mode = #tpu.pipeline_mode<synchronous>, transform_indices = @transform_1, window_bounds = array<i64: 128, 128>}, {pipeline_mode = #tpu.pipeline_mode<synchronous>, transform_indices = @transform_2, window_bounds = array<i64: 1, 128>}, {transform_indices = @transform_3, window_bounds = array<i64: 2, 128>}]} {
    %c0_i32 = arith.constant 0 : i32
    %0 = arith.cmpi eq, %arg1, %c0_i32 : i32
    %1 = arith.extui %0 : i1 to i32
    %c0_i32_0 = arith.constant 0 : i32
    %2 = arith.cmpi ne, %1, %c0_i32_0 : i32
    scf.if %2 {
      %cst = arith.constant 0.000000e+00 : f32
      %10 = vector.broadcast %cst : f32 to vector<2x8x128xf32>
      %c0_11 = arith.constant 0 : index
      %c0_12 = arith.constant 0 : index
      %c0_13 = arith.constant 0 : index
      %11 = vector.load %arg6[%c0_11, %c0_12, %c0_13] : memref<2x8x128xf32, #tpu.memory_space<vmem>>, vector<2x8x128xf32>
      tpu.vector_store %arg6[%c0_11, %c0_12, %c0_13], %10 {strides = array<i32>} : memref<2x8x128xf32, #tpu.memory_space<vmem>>, vector<2x8x128xf32>,
    } else {
    }
    %c0 = arith.constant 0 : index
    %c0_1 = arith.constant 0 : index
    %c0_2 = arith.constant 0 : index
    %3 = vector.load %arg2[%c0, %c0_1, %c0_2] : memref<2x8x128xf32, #tpu.memory_space<vmem>>, vector<2x8x128xf32>
    %c0_3 = arith.constant 0 : index
    %c0_4 = arith.constant 0 : index
    %c0_5 = arith.constant 0 : index
    %4 = vector.load %arg6[%c0_3, %c0_4, %c0_5] : memref<2x8x128xf32, #tpu.memory_space<vmem>>, vector<2x8x128xf32>
    %5 = arith.addf %4, %3 : vector<2x8x128xf32>
    %c0_6 = arith.constant 0 : index
    %c0_7 = arith.constant 0 : index
    %c0_8 = arith.constant 0 : index
    %6 = vector.load %arg6[%c0_6, %c0_7, %c0_8] : memref<2x8x128xf32, #tpu.memory_space<vmem>>, vector<2x8x128xf32>
    tpu.vector_store %arg6[%c0_6, %c0_7, %c0_8], %5 {strides = array<i32>} : memref<2x8x128xf32, #tpu.memory_space<vmem>>, vector<2x8x128xf32>,
    %c0_i32_9 = arith.constant 0 : i32
    %7 = arith.cmpi eq, %arg1, %c0_i32_9 : i32
    %8 = arith.extui %7 : i1 to i32
    %c0_i32_10 = arith.constant 0 : i32
    %9 = arith.cmpi ne, %8, %c0_i32_10 : i32
    scf.if %9 {
      %c0_11 = arith.constant 0 : index
      %c0_12 = arith.constant 0 : index
      %c0_13 = arith.constant 0 : index
      %10 = vector.load %arg6[%c0_11, %c0_12, %c0_13] : memref<2x8x128xf32, #tpu.memory_space<vmem>>, vector<2x8x128xf32>
      %cst = arith.constant dense<0.000000e+00> : vector<2x128xf32>
      %11 = vector.multi_reduction <add>, %10, %cst [1] : vector<2x8x128xf32> to vector<2x128xf32>
      %c0_14 = arith.constant 0 : index
      %c0_15 = arith.constant 0 : index
      %12 = vector.load %arg3[%c0_14, %c0_15] : memref<128x128xf32, #tpu.memory_space<vmem>>, vector<128x128xf32>
      %cst_16 = arith.constant dense<0.000000e+00> : vector<2x128xf32>
      %13 = tpu.matmul %11, %12, %cst_16 {dimension_numbers = #tpu.dot_dimension_numbers<[1], [0], [0], [1], [0, 0, 1, 1], [], []>} : vector<2x128xf32>, vector<128x128xf32>, vector<2x128xf32> -> vector<2x128xf32>
      %c0_17 = arith.constant 0 : index
      %c0_18 = arith.constant 0 : index
      %14 = vector.load %arg4[%c0_17, %c0_18] : memref<1x128xf32, #tpu.memory_space<vmem>>, vector<1x128xf32>
      %15 = vector.broadcast %14 : vector<1x128xf32> to vector<2x128xf32>
      %16 = arith.addf %13, %15 : vector<2x128xf32>
      %c0_19 = arith.constant 0 : index
      %c0_20 = arith.constant 0 : index
      %17 = vector.load %arg5[%c0_19, %c0_20] : memref<2x128xf32, #tpu.memory_space<vmem>>, vector<2x128xf32>
      tpu.vector_store %arg5[%c0_19, %c0_20], %16 {strides = array<i32>} : memref<2x128xf32, #tpu.memory_space<vmem>>, vector<2x128xf32>,
    } else {
    }
    return
  }
  func.func @transform_0(%arg0: i32, %arg1: i32) -> (i32, i32, i32) {
    %c0_i32 = arith.constant 0 : i32
    %c0_i32_0 = arith.constant 0 : i32
    return %arg0, %arg1, %c0_i32 : i32, i32, i32
  }
  func.func @transform_1(%arg0: i32, %arg1: i32) -> (i32, i32) {
    %c0_i32 = arith.constant 0 : i32
    %c0_i32_0 = arith.constant 0 : i32
    %c0_i32_1 = arith.constant 0 : i32
    return %c0_i32, %c0_i32_0 : i32, i32
  }
  func.func @transform_2(%arg0: i32, %arg1: i32) -> (i32, i32) {
    %c0_i32 = arith.constant 0 : i32
    %c0_i32_0 = arith.constant 0 : i32
    %c0_i32_1 = arith.constant 0 : i32
    return %c0_i32, %c0_i32_0 : i32, i32
  }
  func.func @transform_3(%arg0: i32, %arg1: i32) -> (i32, i32) {
    %c0_i32 = arith.constant 0 : i32
    %c0_i32_0 = arith.constant 0 : i32
    return %arg0, %c0_i32 : i32, i32
  }
}

</mosaic_0001>

<llo_original>
// kernel: tpu_custom_call.1
$region0: #{tpu_custom_call.1}
  #allocation0 [shape = 'u32[]', space=smem, size = 0x4, offset = 0x4, fixed_abs, tag = 'smem constant byte address 0x4 - core index']
  #allocation1 [shape = 'u32[144,128]{1,0:T(1,128)}', space=vmem, size = 0x12000, scoped, tag = 'internal scratch']
  #allocation2 [shape = 'f32[2,8,128]{2,1,0:T(8,128)}', space=vmem, size = 0x2000, scoped, tag = 'scratch operand']
  %s0 = inlined_call_operand.hbm [shape: f32[2,8,128], index: 0, kind: input, shape index: {}]
  %s1 = inlined_call_operand.hbm [shape: f32[128,128], index: 1, kind: input, shape index: {}]
  %s2 = inlined_call_operand.vmem [shape: f32[1,128], index: 2, kind: input, shape index: {}]
  %s3 = inlined_call_operand.hbm [shape: f32[2,128], index: 3, kind: output, shape index: {}]
  %s4 = sld [smem:[#allocation0]]
  $region38: #{tpu_custom_call.1} parent=0
    _
  %s6 = ssub.s32 1, %s4
  %s7 = scalar_select 0, %s6, %s4
  $region1: #{tpu_custom_call.1} parent=0
    #allocation3 [shape = 'u8[8192]{0}', space=vmem, size = 0x2000, scoped, tag = 'input window, operand 0, single buffered']
    #allocation4 [shape = 's32[1]{0}', space=sflag, size = 0x4, scoped, tag = 'scoped memory for tpu_custom_call.1']
    #allocation5 [shape = 's32[1]{0}', space=sflag, size = 0x4, scoped, tag = 'scoped memory for tpu_custom_call.1']
    #allocation6 [shape = 'u8[65536]{0}', space=vmem, size = 0x10000, scoped, tag = 'input window, operand 1, single buffered']
    #allocation7 [shape = 's32[1]{0}', space=sflag, size = 0x4, scoped, tag = 'scoped memory for tpu_custom_call.1']
    #allocation8 [shape = 'u8[1024]{0}', space=vmem, size = 0x400, scoped, tag = 'output window, operand 0, single buffered']
    %8 = vsyncpa [#allocation4], 0
    %9 = vsyncpa [#allocation7], 0
    %10 = vsyncpa [#allocation5], 0
    // Predicated region
    $region2: #{tpu_custom_call.1} parent=1 // pred_check
      _
    $region3: #{tpu_custom_call.1} parent=1 // pred_check_branch
      %12 = sbr.rel (0) target = $region5
    $region4: #{tpu_custom_call.1} parent=1 // pred_region
      %s14 = ssub.s32 256, 256
      %15 = vsyncadd [#allocation4], %s14
      %s16 = sshll.u32 [#allocation3], 4
      %s17 = int_to_ptr.vmem [resolvable:$true] %s16
      %22 = dma.hbm_to_vmem [thread:$0]  %s0, 256, %s17, [#allocation4], 128, 128, 8
    $region5: #{tpu_custom_call.1} parent=1 // pred_fallthru
      _
    // Predicated region
    $region6: #{tpu_custom_call.1} parent=1 // pred_check
      _
    $region7: #{tpu_custom_call.1} parent=1 // pred_check_branch
      %24 = sbr.rel (0) target = $region9
    $region8: #{tpu_custom_call.1} parent=1 // pred_region
      %s26 = ssub.s32 2048, 2048
      %27 = vsyncadd [#allocation7], %s26
      %s28 = sshll.u32 [#allocation6], 4
      %s29 = int_to_ptr.vmem [resolvable:$true] %s28
      %34 = dma.hbm_to_vmem [thread:$0]  %s1, 2048, %s29, [#allocation7], 128, 128, 8
    $region9: #{tpu_custom_call.1} parent=1 // pred_fallthru
      _
    // Predicated region
    $region10: #{tpu_custom_call.1} parent=1 // pred_check
      _
    $region11: #{tpu_custom_call.1} parent=1 // pred_check_branch
      %36 = sbr.rel (0) target = $region13
    $region12: #{tpu_custom_call.1} parent=1 // pred_region
      _
    $region13: #{tpu_custom_call.1} parent=1 // pred_fallthru
      _
    // Predicated region
    $region14: #{tpu_custom_call.1} parent=1 // pred_check
      _
    $region15: #{tpu_custom_call.1} parent=1 // pred_check_branch
      %38 = sbr.rel (0) target = $region17
    $region16: #{tpu_custom_call.1} parent=1 // pred_region
      %39 = dma.done [#allocation4], 256
    $region17: #{tpu_custom_call.1} parent=1 // pred_fallthru
      _
    // Predicated region
    $region18: #{tpu_custom_call.1} parent=1 // pred_check
      _
    $region19: #{tpu_custom_call.1} parent=1 // pred_check_branch
      %41 = sbr.rel (0) target = $region21
    $region20: #{tpu_custom_call.1} parent=1 // pred_region
      %42 = dma.done [#allocation7], 2048
    $region21: #{tpu_custom_call.1} parent=1 // pred_fallthru
      _
    %p43 = scmp.eq.s32.totalorder 0, 0
    // Predicated region
    $region22: #{tpu_custom_call.1} parent=1 // pred_check
      %p44 = pneg %p43
    $region23: #{tpu_custom_call.1} parent=1 // pred_check_branch
      %46 = sbr.rel (%p44) target = $region25
    $region24: #{tpu_custom_call.1} parent=1 // pred_region
      %47 = vst [vmem:[#allocation2] sm:$0xff] 0.0
      %48 = vst [vmem:[#allocation2 + $0x8] sm:$0xff] 0.0
    $region25: #{tpu_custom_call.1} parent=1 // pred_fallthru
      _
    %v49 = vld [vmem:[#allocation3] sm:$0xff]
    %v50 = vld [vmem:[#allocation3 + $0x8] sm:$0xff]
    %v51 = vld [vmem:[#allocation2] sm:$0xff]
    %v52 = vld [vmem:[#allocation2 + $0x8] sm:$0xff]
    %v53 = vadd.f32 %v51, %v49
    %v54 = vadd.f32 %v52, %v50
    %55 = vst [vmem:[#allocation2] sm:$0xff] %v53
    %56 = vst [vmem:[#allocation2 + $0x8] sm:$0xff] %v54
    // Predicated region
    $region26: #{tpu_custom_call.1} parent=1 // pred_check
      %p57 = pneg %p43
    $region27: #{tpu_custom_call.1} parent=1 // pred_check_branch
      %59 = sbr.rel (%p57) target = $region29
    $region28: #{tpu_custom_call.1} parent=1 // pred_region
      %v60 = vld [vmem:[#allocation2] sm:$0xff]
      %v61 = vld [vmem:[#allocation2 + $0x8] sm:$0xff]
      %v62 = vrot.slane %v60, 4
      %v63 = vadd.f32 %v60, %v62
      %v64 = vrot.slane %v63, 2
      %v65 = vadd.f32 %v63, %v64
      %v66 = vrot.slane %v65, 1
      %v67 = vadd.f32 %v65, %v66
      %v68 = vrot.slane %v61, 4
      %v69 = vadd.f32 %v61, %v68
      %v70 = vrot.slane %v69, 2
      %v71 = vadd.f32 %v69, %v70
      %v72 = vrot.slane %v71, 1
      %v73 = vadd.f32 %v71, %v72
      %v74 = vld [vmem:[#allocation6] sm:$0xff]
      %v75 = vld [vmem:[#allocation6 + $0x8] sm:$0xff]
      %v76 = vld [vmem:[#allocation6 + $0x10] sm:$0xff]
      %v77 = vld [vmem:[#allocation6 + $0x18] sm:$0xff]
      %v78 = vld [vmem:[#allocation6 + $0x20] sm:$0xff]
      %v79 = vld [vmem:[#allocation6 + $0x28] sm:$0xff]
      %v80 = vld [vmem:[#allocation6 + $0x30] sm:$0xff]
      %v81 = vld [vmem:[#allocation6 + $0x38] sm:$0xff]
      %v82 = vld [vmem:[#allocation6 + $0x40] sm:$0xff]
      %v83 = vld [vmem:[#allocation6 + $0x48] sm:$0xff]
      %v84 = vld [vmem:[#allocation6 + $0x50] sm:$0xff]
      %v85 = vld [vmem:[#allocation6 + $0x58] sm:$0xff]
      %v86 = vld [vmem:[#allocation6 + $0x60] sm:$0xff]
      %v87 = vld [vmem:[#allocation6 + $0x68] sm:$0xff]
      %v88 = vld [vmem:[#allocation6 + $0x70] sm:$0xff]
      %v89 = vld [vmem:[#allocation6 + $0x78] sm:$0xff]
      %v90 = vld [vmem:[%s2] sm:$0x1]
      %v92 = vlaneseq
      %v93 = vshrl.u32 %v92, 7
      %v94 = vsub.s32 0, %v93
      %v95 = vrot.slane %v90, %v94
      %vm99 = vcmask 1041409
      %v100 = vsel %vm99, %v73, %v67
      %102 = vmatprep.subr.mxu0 0.0
      %103 = vmatpush1.msra.mxu0 %v74
      %104 = vmatprep.subr.mxu0 0.0
      %105 = vmatpush1.msra.mxu0 %v75
      %106 = vmatprep.subr.mxu0 0.0
      %107 = vmatpush1.msra.mxu0 %v76
      %108 = vmatprep.subr.mxu0 0.0
      %109 = vmatpush1.msra.mxu0 %v77
      %110 = vmatprep.subr.mxu0 0.0
      %111 = vmatpush1.msra.mxu0 %v78
      %112 = vmatprep.subr.mxu0 0.0
      %113 = vmatpush1.msra.mxu0 %v79
      %114 = vmatprep.subr.mxu0 0.0
      %115 = vmatpush1.msra.mxu0 %v80
      %116 = vmatprep.subr.mxu0 0.0
      %117 = vmatpush1.msra.mxu0 %v81
      %118 = vmatprep.subr.mxu0 0.0
      %119 = vmatpush1.msra.mxu0 %v82
      %120 = vmatprep.subr.mxu0 0.0
      %121 = vmatpush1.msra.mxu0 %v83
      %122 = vmatprep.subr.mxu0 0.0
      %123 = vmatpush1.msra.mxu0 %v84
      %124 = vmatprep.subr.mxu0 0.0
      %125 = vmatpush1.msra.mxu0 %v85
      %126 = vmatprep.subr.mxu0 0.0
      %127 = vmatpush1.msra.mxu0 %v86
      %128 = vmatprep.subr.mxu0 0.0
      %129 = vmatpush1.msra.mxu0 %v87
      %130 = vmatprep.subr.mxu0 0.0
      %131 = vmatpush1.msra.mxu0 %v88
      %132 = vmatprep.subr.mxu0 0.0
      %133 = vmatpush1.msra.mxu0 %v89
      %134 = vmatprep.subr.mxu0 0.0
      %135 = vmatpush1.msra.mxu0 0.0
      %136 = vmatprep.subr.mxu0 0.0
      %137 = vmatpush1.msra.mxu0 0.0
      %138 = vmatprep.subr.mxu0 0.0
      %139 = vmatpush1.msra.mxu0 0.0
      %140 = vmatprep.subr.mxu0 0.0
      %141 = vmatpush1.msra.mxu0 0.0
      %142 = vmatprep.subr.mxu0 0.0
      %143 = vmatpush1.msra.mxu0 0.0
      %144 = vmatprep.subr.mxu0 0.0
      %145 = vmatpush1.msra.mxu0 0.0
      %146 = vmatprep.subr.mxu0 0.0
      %147 = vmatpush1.msra.mxu0 0.0
      %148 = vmatprep.subr.mxu0 0.0
      %149 = vmatpush1.msra.mxu0 0.0
      %150 = vmatprep.subr.mxu0 0.0
      %151 = vmatpush1.msra.mxu0 0.0
      %152 = vmatprep.subr.mxu0 0.0
      %153 = vmatpush1.msra.mxu0 0.0
      %154 = vmatprep.subr.mxu0 0.0
      %155 = vmatpush1.msra.mxu0 0.0
      %156 = vmatprep.subr.mxu0 0.0
      %157 = vmatpush1.msra.mxu0 0.0
      %158 = vmatprep.subr.mxu0 0.0
      %159 = vmatpush1.msra.mxu0 0.0
      %160 = vmatprep.subr.mxu0 0.0
      %161 = vmatpush1.msra.mxu0 0.0
      %162 = vmatprep.subr.mxu0 0.0
      %163 = vmatpush1.msra.mxu0 0.0
      %164 = vmatprep.subr.mxu0 0.0
      %165 = vmatpush1.msra.mxu0 0.0
      %166 = vmatprep.mubr.f32.mxu0 0.0
      %167 = vmatmul.mubr.f32.gmra.mrb[0].mxu0 %v100
      %v168 = vpop.f32.mrb[0].mxu0
      %v169 = vadd.f32 %v95, %v168
      %v170 = vpop.f32.mrb[0].mxu0
      %171 = vdwg.mxu0
      %172 = vst [vmem:[#allocation8] sm:$0x3] %v169
    $region29: #{tpu_custom_call.1} parent=1 // pred_fallthru
      _
    // Predicated region
    $region30: #{tpu_custom_call.1} parent=1 // pred_check
      _
    $region31: #{tpu_custom_call.1} parent=1 // pred_check_branch
      %174 = sbr.rel (0) target = $region33
    $region32: #{tpu_custom_call.1} parent=1 // pred_region
      %s176 = ssub.s32 32, 32
      %177 = vsyncadd [#allocation5], %s176
      %s179 = sshll.u32 [#allocation8], 4
      %s180 = int_to_ptr.vmem [resolvable:$true] %s179
      %182 = dma.vmem_to_hbm [thread:$0]  %s180, 32, %s3, [#allocation5]
    $region33: #{tpu_custom_call.1} parent=1 // pred_fallthru
      _
    // Predicated region
    $region34: #{tpu_custom_call.1} parent=1 // pred_check
      _
    $region35: #{tpu_custom_call.1} parent=1 // pred_check_branch
      %184 = sbr.rel (0) target = $region37
    $region36: #{tpu_custom_call.1} parent=1 // pred_region
      %185 = dma.done [#allocation5], 32
    $region37: #{tpu_custom_call.1} parent=1 // pred_fallthru
      _
    %186 = vsyncpa [#allocation4], 1
    %187 = vsyncpa [#allocation7], 1
    %188 = vsyncpa [#allocation5], 1

</llo_original>
